<compile_context>
chip_gen: v6e
topology: v6e:2x2x1
jax: 0.10.0
libtpu: 0.0.40
codegen_flags: <defaults>
</compile_context>

<pallas_src>
import jax
import jax.numpy as jnp
from jax.experimental import pallas as pl
from jax.experimental.pallas import tpu as pltpu


NUM_HIDDEN = 20
LANES = 128


def mlp_kernel(params_ref, x_ref, o_ref):
    # params_ref: SMEM (3*NUM_HIDDEN + 1,) f32 = [w1 (20), b1 (20), w2 (20), b2 (1)]
    # x_ref, o_ref: VMEM (block_rows, 128) f32, lane-dense batch tiles.
    x = x_ref[...]
    acc0 = jnp.zeros_like(x)
    acc1 = jnp.zeros_like(x)
    # Statically unrolled over the 20 hidden units: scalar broadcasts from
    # SMEM feed the VPU; tanh runs on the EUP (the binding unit here).  Two
    # interleaved accumulators break the serial f32-add dependency chain.
    for j in range(0, NUM_HIDDEN, 2):
        w1a = params_ref[j]
        b1a = params_ref[NUM_HIDDEN + j]
        w2a = params_ref[2 * NUM_HIDDEN + j]
        acc0 = acc0 + w2a * jnp.tanh(w1a * x + b1a)

        w1b = params_ref[j + 1]
        b1b = params_ref[NUM_HIDDEN + j + 1]
        w2b = params_ref[2 * NUM_HIDDEN + j + 1]
        acc1 = acc1 + w2b * jnp.tanh(w1b * x + b1b)
    # Add the output bias exactly once at the end.
    o_ref[...] = acc0 + acc1 + params_ref[3 * NUM_HIDDEN]


def neural_net_forward(x, w1, b1, w2, b2, *, max_block_rows=2048):
    """x: (N, 1) float32 -> (N, 1) float32."""
    n = x.shape[0]

    # Flatten all 61 parameters into one SMEM-resident vector.
    params = jnp.concatenate(
        [w1.reshape(-1), b1.reshape(-1), w2.reshape(-1), b2.reshape(-1)]
    ).astype(jnp.float32)

    # Lane-dense layout: pad N up to rows*128 with rows a multiple of 8 and of
    # the chosen block size, then tile rows over a 1-D parallel grid.
    cdiv = lambda a, b: (a + b - 1) // b
    rows = max(cdiv(n, LANES), 8)
    rows = cdiv(rows, 8) * 8
    block_rows = min(max_block_rows, rows)          # (2048,128) f32 = 1 MiB/buffer
    num_blocks = cdiv(rows, block_rows)
    rows = num_blocks * block_rows
    n_pad = rows * LANES

    xf = jnp.zeros((n_pad,), jnp.float32).at[:n].set(
        x.reshape(-1).astype(jnp.float32))
    x2d = xf.reshape(rows, LANES)

    out2d = pl.pallas_call(
        mlp_kernel,
        out_shape=jax.ShapeDtypeStruct((rows, LANES), jnp.float32),
        grid=(num_blocks,),
        in_specs=[
            pl.BlockSpec(memory_space=pltpu.MemorySpace.SMEM),     # params
            pl.BlockSpec((block_rows, LANES), lambda i: (i, 0)),   # x tiles
        ],
        out_specs=pl.BlockSpec((block_rows, LANES), lambda i: (i, 0)),
        compiler_params=pltpu.CompilerParams(
            dimension_semantics=("parallel",)),
    )(params, x2d)

    return out2d.reshape(-1)[:n].reshape(n, 1)


def init_params(key):
    """Deterministic init matching PyTorch Linear shapes.

    layer1: Linear(1, 20)  -> W1 (1, 20) [stored as (in, out)], b1 (20,)
    layer2: Linear(20, 1)  -> W2 (20, 1), b2 (1,)
    """
    k1, k2, k3, k4 = jax.random.split(key, 4)
    # PyTorch default: U(-1/sqrt(fan_in), 1/sqrt(fan_in))
    bound1 = 1.0 / jnp.sqrt(1.0)
    bound2 = 1.0 / jnp.sqrt(20.0)
    w1 = jax.random.uniform(k1, (1, 20), jnp.float32, -bound1, bound1)
    b1 = jax.random.uniform(k2, (20,), jnp.float32, -bound1, bound1)
    w2 = jax.random.uniform(k3, (20, 1), jnp.float32, -bound2, bound2)
    b2 = jax.random.uniform(k4, (1,), jnp.float32, -bound2, bound2)
    return w1, b1, w2, b2


if __name__ == "__main__":
    key = jax.random.PRNGKey(0)
    k_params, k_x = jax.random.split(key)
    w1, b1, w2, b2 = init_params(k_params)

    # Small batch of scalar inputs, shape (N, 1) as implied by Linear(1, 20).
    N = 8
    x = jax.random.normal(k_x, (N, 1), jnp.float32)

    out = neural_net_forward(x, w1, b1, w2, b2)
    out = jax.block_until_ready(out)

    # Cross-check against a plain-JAX reference.
    ref = jnp.tanh(x @ w1 + b1) @ w2 + b2
    assert out.shape == (N, 1)
    assert jnp.allclose(out, ref, atol=1e-5, rtol=1e-5)

    # Second check: non-lane-multiple batch that exercises padding and a
    # multi-step grid (small block_rows forces 3 grid steps).
    k_x2 = jax.random.fold_in(k_x, 1)
    x2 = jax.random.normal(k_x2, (3000, 1), jnp.float32)
    out2 = jax.block_until_ready(
        neural_net_forward(x2, w1, b1, w2, b2, max_block_rows=8))
    ref2 = jnp.tanh(x2 @ w1 + b1) @ w2 + b2
    assert out2.shape == (3000, 1)
    assert jnp.allclose(out2, ref2, atol=1e-5, rtol=1e-5)

    print("KERNEL_OK")
</pallas_src>

<mosaic_0001>
module attributes {stable_mosaic.version = 11 : i64} {
  func.func @mlp_kernel(%arg0: i32, %arg1: memref<61xf32, #tpu.memory_space<smem>>, %arg2: memref<8x128xf32, #tpu.memory_space<vmem>>, %arg3: memref<8x128xf32, #tpu.memory_space<vmem>>) attributes {dimension_semantics = [#tpu.dimension_semantics<parallel>], iteration_bounds = array<i64: 1>, scalar_prefetch = 0 : i64, scratch_operands = 0 : i64, tpu.core_type = #tpu.core_type<tc>, window_params = [{transform_indices = @transform_0, window_bounds = array<i64: 61>}, {transform_indices = @transform_1, window_bounds = array<i64: 8, 128>}, {transform_indices = @transform_2, window_bounds = array<i64: 8, 128>}]} {
    %c0 = arith.constant 0 : index
    %c0_0 = arith.constant 0 : index
    %0 = vector.load %arg2[%c0, %c0_0] : memref<8x128xf32, #tpu.memory_space<vmem>>, vector<8x128xf32>
    %cst = arith.constant 0.000000e+00 : f32
    %1 = vector.broadcast %cst : f32 to vector<8x128xf32>
    %cst_1 = arith.constant 0.000000e+00 : f32
    %2 = vector.broadcast %cst_1 : f32 to vector<8x128xf32>
    %c0_2 = arith.constant 0 : index
    %3 = memref.load %arg1[%c0_2] : memref<61xf32, #tpu.memory_space<smem>>
    %c20 = arith.constant 20 : index
    %4 = memref.load %arg1[%c20] : memref<61xf32, #tpu.memory_space<smem>>
    %c40 = arith.constant 40 : index
    %5 = memref.load %arg1[%c40] : memref<61xf32, #tpu.memory_space<smem>>
    %6 = vector.broadcast %3 : f32 to vector<8x128xf32>
    %7 = arith.mulf %6, %0 : vector<8x128xf32>
    %8 = vector.broadcast %4 : f32 to vector<8x128xf32>
    %9 = arith.addf %7, %8 : vector<8x128xf32>
    %10 = math.tanh %9 : vector<8x128xf32>
    %11 = vector.broadcast %5 : f32 to vector<8x128xf32>
    %12 = arith.mulf %11, %10 : vector<8x128xf32>
    %13 = arith.addf %1, %12 : vector<8x128xf32>
    %c1 = arith.constant 1 : index
    %14 = memref.load %arg1[%c1] : memref<61xf32, #tpu.memory_space<smem>>
    %c21 = arith.constant 21 : index
    %15 = memref.load %arg1[%c21] : memref<61xf32, #tpu.memory_space<smem>>
    %c41 = arith.constant 41 : index
    %16 = memref.load %arg1[%c41] : memref<61xf32, #tpu.memory_space<smem>>
    %17 = vector.broadcast %14 : f32 to vector<8x128xf32>
    %18 = arith.mulf %17, %0 : vector<8x128xf32>
    %19 = vector.broadcast %15 : f32 to vector<8x128xf32>
    %20 = arith.addf %18, %19 : vector<8x128xf32>
    %21 = math.tanh %20 : vector<8x128xf32>
    %22 = vector.broadcast %16 : f32 to vector<8x128xf32>
    %23 = arith.mulf %22, %21 : vector<8x128xf32>
    %24 = arith.addf %2, %23 : vector<8x128xf32>
    %c2 = arith.constant 2 : index
    %25 = memref.load %arg1[%c2] : memref<61xf32, #tpu.memory_space<smem>>
    %c22 = arith.constant 22 : index
    %26 = memref.load %arg1[%c22] : memref<61xf32, #tpu.memory_space<smem>>
    %c42 = arith.constant 42 : index
    %27 = memref.load %arg1[%c42] : memref<61xf32, #tpu.memory_space<smem>>
    %28 = vector.broadcast %25 : f32 to vector<8x128xf32>
    %29 = arith.mulf %28, %0 : vector<8x128xf32>
    %30 = vector.broadcast %26 : f32 to vector<8x128xf32>
    %31 = arith.addf %29, %30 : vector<8x128xf32>
    %32 = math.tanh %31 : vector<8x128xf32>
    %33 = vector.broadcast %27 : f32 to vector<8x128xf32>
    %34 = arith.mulf %33, %32 : vector<8x128xf32>
    %35 = arith.addf %13, %34 : vector<8x128xf32>
    %c3 = arith.constant 3 : index
    %36 = memref.load %arg1[%c3] : memref<61xf32, #tpu.memory_space<smem>>
    %c23 = arith.constant 23 : index
    %37 = memref.load %arg1[%c23] : memref<61xf32, #tpu.memory_space<smem>>
    %c43 = arith.constant 43 : index
    %38 = memref.load %arg1[%c43] : memref<61xf32, #tpu.memory_space<smem>>
    %39 = vector.broadcast %36 : f32 to vector<8x128xf32>
    %40 = arith.mulf %39, %0 : vector<8x128xf32>
    %41 = vector.broadcast %37 : f32 to vector<8x128xf32>
    %42 = arith.addf %40, %41 : vector<8x128xf32>
    %43 = math.tanh %42 : vector<8x128xf32>
    %44 = vector.broadcast %38 : f32 to vector<8x128xf32>
    %45 = arith.mulf %44, %43 : vector<8x128xf32>
    %46 = arith.addf %24, %45 : vector<8x128xf32>
    %c4 = arith.constant 4 : index
    %47 = memref.load %arg1[%c4] : memref<61xf32, #tpu.memory_space<smem>>
    %c24 = arith.constant 24 : index
    %48 = memref.load %arg1[%c24] : memref<61xf32, #tpu.memory_space<smem>>
    %c44 = arith.constant 44 : index
    %49 = memref.load %arg1[%c44] : memref<61xf32, #tpu.memory_space<smem>>
    %50 = vector.broadcast %47 : f32 to vector<8x128xf32>
    %51 = arith.mulf %50, %0 : vector<8x128xf32>
    %52 = vector.broadcast %48 : f32 to vector<8x128xf32>
    %53 = arith.addf %51, %52 : vector<8x128xf32>
    %54 = math.tanh %53 : vector<8x128xf32>
    %55 = vector.broadcast %49 : f32 to vector<8x128xf32>
    %56 = arith.mulf %55, %54 : vector<8x128xf32>
    %57 = arith.addf %35, %56 : vector<8x128xf32>
    %c5 = arith.constant 5 : index
    %58 = memref.load %arg1[%c5] : memref<61xf32, #tpu.memory_space<smem>>
    %c25 = arith.constant 25 : index
    %59 = memref.load %arg1[%c25] : memref<61xf32, #tpu.memory_space<smem>>
    %c45 = arith.constant 45 : index
    %60 = memref.load %arg1[%c45] : memref<61xf32, #tpu.memory_space<smem>>
    %61 = vector.broadcast %58 : f32 to vector<8x128xf32>
    %62 = arith.mulf %61, %0 : vector<8x128xf32>
    %63 = vector.broadcast %59 : f32 to vector<8x128xf32>
    %64 = arith.addf %62, %63 : vector<8x128xf32>
    %65 = math.tanh %64 : vector<8x128xf32>
    %66 = vector.broadcast %60 : f32 to vector<8x128xf32>
    %67 = arith.mulf %66, %65 : vector<8x128xf32>
    %68 = arith.addf %46, %67 : vector<8x128xf32>
    %c6 = arith.constant 6 : index
    %69 = memref.load %arg1[%c6] : memref<61xf32, #tpu.memory_space<smem>>
    %c26 = arith.constant 26 : index
    %70 = memref.load %arg1[%c26] : memref<61xf32, #tpu.memory_space<smem>>
    %c46 = arith.constant 46 : index
    %71 = memref.load %arg1[%c46] : memref<61xf32, #tpu.memory_space<smem>>
    %72 = vector.broadcast %69 : f32 to vector<8x128xf32>
    %73 = arith.mulf %72, %0 : vector<8x128xf32>
    %74 = vector.broadcast %70 : f32 to vector<8x128xf32>
    %75 = arith.addf %73, %74 : vector<8x128xf32>
    %76 = math.tanh %75 : vector<8x128xf32>
    %77 = vector.broadcast %71 : f32 to vector<8x128xf32>
    %78 = arith.mulf %77, %76 : vector<8x128xf32>
    %79 = arith.addf %57, %78 : vector<8x128xf32>
    %c7 = arith.constant 7 : index
    %80 = memref.load %arg1[%c7] : memref<61xf32, #tpu.memory_space<smem>>
    %c27 = arith.constant 27 : index
    %81 = memref.load %arg1[%c27] : memref<61xf32, #tpu.memory_space<smem>>
    %c47 = arith.constant 47 : index
    %82 = memref.load %arg1[%c47] : memref<61xf32, #tpu.memory_space<smem>>
    %83 = vector.broadcast %80 : f32 to vector<8x128xf32>
    %84 = arith.mulf %83, %0 : vector<8x128xf32>
    %85 = vector.broadcast %81 : f32 to vector<8x128xf32>
    %86 = arith.addf %84, %85 : vector<8x128xf32>
    %87 = math.tanh %86 : vector<8x128xf32>
    %88 = vector.broadcast %82 : f32 to vector<8x128xf32>
    %89 = arith.mulf %88, %87 : vector<8x128xf32>
    %90 = arith.addf %68, %89 : vector<8x128xf32>
    %c8 = arith.constant 8 : index
    %91 = memref.load %arg1[%c8] : memref<61xf32, #tpu.memory_space<smem>>
    %c28 = arith.constant 28 : index
    %92 = memref.load %arg1[%c28] : memref<61xf32, #tpu.memory_space<smem>>
    %c48 = arith.constant 48 : index
    %93 = memref.load %arg1[%c48] : memref<61xf32, #tpu.memory_space<smem>>
    %94 = vector.broadcast %91 : f32 to vector<8x128xf32>
    %95 = arith.mulf %94, %0 : vector<8x128xf32>
    %96 = vector.broadcast %92 : f32 to vector<8x128xf32>
    %97 = arith.addf %95, %96 : vector<8x128xf32>
    %98 = math.tanh %97 : vector<8x128xf32>
    %99 = vector.broadcast %93 : f32 to vector<8x128xf32>
    %100 = arith.mulf %99, %98 : vector<8x128xf32>
    %101 = arith.addf %79, %100 : vector<8x128xf32>
    %c9 = arith.constant 9 : index
    %102 = memref.load %arg1[%c9] : memref<61xf32, #tpu.memory_space<smem>>
    %c29 = arith.constant 29 : index
    %103 = memref.load %arg1[%c29] : memref<61xf32, #tpu.memory_space<smem>>
    %c49 = arith.constant 49 : index
    %104 = memref.load %arg1[%c49] : memref<61xf32, #tpu.memory_space<smem>>
    %105 = vector.broadcast %102 : f32 to vector<8x128xf32>
    %106 = arith.mulf %105, %0 : vector<8x128xf32>
    %107 = vector.broadcast %103 : f32 to vector<8x128xf32>
    %108 = arith.addf %106, %107 : vector<8x128xf32>
    %109 = math.tanh %108 : vector<8x128xf32>
    %110 = vector.broadcast %104 : f32 to vector<8x128xf32>
    %111 = arith.mulf %110, %109 : vector<8x128xf32>
    %112 = arith.addf %90, %111 : vector<8x128xf32>
    %c10 = arith.constant 10 : index
    %113 = memref.load %arg1[%c10] : memref<61xf32, #tpu.memory_space<smem>>
    %c30 = arith.constant 30 : index
    %114 = memref.load %arg1[%c30] : memref<61xf32, #tpu.memory_space<smem>>
    %c50 = arith.constant 50 : index
    %115 = memref.load %arg1[%c50] : memref<61xf32, #tpu.memory_space<smem>>
    %116 = vector.broadcast %113 : f32 to vector<8x128xf32>
    %117 = arith.mulf %116, %0 : vector<8x128xf32>
    %118 = vector.broadcast %114 : f32 to vector<8x128xf32>
    %119 = arith.addf %117, %118 : vector<8x128xf32>
    %120 = math.tanh %119 : vector<8x128xf32>
    %121 = vector.broadcast %115 : f32 to vector<8x128xf32>
    %122 = arith.mulf %121, %120 : vector<8x128xf32>
    %123 = arith.addf %101, %122 : vector<8x128xf32>
    %c11 = arith.constant 11 : index
    %124 = memref.load %arg1[%c11] : memref<61xf32, #tpu.memory_space<smem>>
    %c31 = arith.constant 31 : index
    %125 = memref.load %arg1[%c31] : memref<61xf32, #tpu.memory_space<smem>>
    %c51 = arith.constant 51 : index
    %126 = memref.load %arg1[%c51] : memref<61xf32, #tpu.memory_space<smem>>
    %127 = vector.broadcast %124 : f32 to vector<8x128xf32>
    %128 = arith.mulf %127, %0 : vector<8x128xf32>
    %129 = vector.broadcast %125 : f32 to vector<8x128xf32>
    %130 = arith.addf %128, %129 : vector<8x128xf32>
    %131 = math.tanh %130 : vector<8x128xf32>
    %132 = vector.broadcast %126 : f32 to vector<8x128xf32>
    %133 = arith.mulf %132, %131 : vector<8x128xf32>
    %134 = arith.addf %112, %133 : vector<8x128xf32>
    %c12 = arith.constant 12 : index
    %135 = memref.load %arg1[%c12] : memref<61xf32, #tpu.memory_space<smem>>
    %c32 = arith.constant 32 : index
    %136 = memref.load %arg1[%c32] : memref<61xf32, #tpu.memory_space<smem>>
    %c52 = arith.constant 52 : index
    %137 = memref.load %arg1[%c52] : memref<61xf32, #tpu.memory_space<smem>>
    %138 = vector.broadcast %135 : f32 to vector<8x128xf32>
    %139 = arith.mulf %138, %0 : vector<8x128xf32>
    %140 = vector.broadcast %136 : f32 to vector<8x128xf32>
    %141 = arith.addf %139, %140 : vector<8x128xf32>
    %142 = math.tanh %141 : vector<8x128xf32>
    %143 = vector.broadcast %137 : f32 to vector<8x128xf32>
    %144 = arith.mulf %143, %142 : vector<8x128xf32>
    %145 = arith.addf %123, %144 : vector<8x128xf32>
    %c13 = arith.constant 13 : index
    %146 = memref.load %arg1[%c13] : memref<61xf32, #tpu.memory_space<smem>>
    %c33 = arith.constant 33 : index
    %147 = memref.load %arg1[%c33] : memref<61xf32, #tpu.memory_space<smem>>
    %c53 = arith.constant 53 : index
    %148 = memref.load %arg1[%c53] : memref<61xf32, #tpu.memory_space<smem>>
    %149 = vector.broadcast %146 : f32 to vector<8x128xf32>
    %150 = arith.mulf %149, %0 : vector<8x128xf32>
    %151 = vector.broadcast %147 : f32 to vector<8x128xf32>
    %152 = arith.addf %150, %151 : vector<8x128xf32>
    %153 = math.tanh %152 : vector<8x128xf32>
    %154 = vector.broadcast %148 : f32 to vector<8x128xf32>
    %155 = arith.mulf %154, %153 : vector<8x128xf32>
    %156 = arith.addf %134, %155 : vector<8x128xf32>
    %c14 = arith.constant 14 : index
    %157 = memref.load %arg1[%c14] : memref<61xf32, #tpu.memory_space<smem>>
    %c34 = arith.constant 34 : index
    %158 = memref.load %arg1[%c34] : memref<61xf32, #tpu.memory_space<smem>>
    %c54 = arith.constant 54 : index
    %159 = memref.load %arg1[%c54] : memref<61xf32, #tpu.memory_space<smem>>
    %160 = vector.broadcast %157 : f32 to vector<8x128xf32>
    %161 = arith.mulf %160, %0 : vector<8x128xf32>
    %162 = vector.broadcast %158 : f32 to vector<8x128xf32>
    %163 = arith.addf %161, %162 : vector<8x128xf32>
    %164 = math.tanh %163 : vector<8x128xf32>
    %165 = vector.broadcast %159 : f32 to vector<8x128xf32>
    %166 = arith.mulf %165, %164 : vector<8x128xf32>
    %167 = arith.addf %145, %166 : vector<8x128xf32>
    %c15 = arith.constant 15 : index
    %168 = memref.load %arg1[%c15] : memref<61xf32, #tpu.memory_space<smem>>
    %c35 = arith.constant 35 : index
    %169 = memref.load %arg1[%c35] : memref<61xf32, #tpu.memory_space<smem>>
    %c55 = arith.constant 55 : index
    %170 = memref.load %arg1[%c55] : memref<61xf32, #tpu.memory_space<smem>>
    %171 = vector.broadcast %168 : f32 to vector<8x128xf32>
    %172 = arith.mulf %171, %0 : vector<8x128xf32>
    %173 = vector.broadcast %169 : f32 to vector<8x128xf32>
    %174 = arith.addf %172, %173 : vector<8x128xf32>
    %175 = math.tanh %174 : vector<8x128xf32>
    %176 = vector.broadcast %170 : f32 to vector<8x128xf32>
    %177 = arith.mulf %176, %175 : vector<8x128xf32>
    %178 = arith.addf %156, %177 : vector<8x128xf32>
    %c16 = arith.constant 16 : index
    %179 = memref.load %arg1[%c16] : memref<61xf32, #tpu.memory_space<smem>>
    %c36 = arith.constant 36 : index
    %180 = memref.load %arg1[%c36] : memref<61xf32, #tpu.memory_space<smem>>
    %c56 = arith.constant 56 : index
    %181 = memref.load %arg1[%c56] : memref<61xf32, #tpu.memory_space<smem>>
    %182 = vector.broadcast %179 : f32 to vector<8x128xf32>
    %183 = arith.mulf %182, %0 : vector<8x128xf32>
    %184 = vector.broadcast %180 : f32 to vector<8x128xf32>
    %185 = arith.addf %183, %184 : vector<8x128xf32>
    %186 = math.tanh %185 : vector<8x128xf32>
    %187 = vector.broadcast %181 : f32 to vector<8x128xf32>
    %188 = arith.mulf %187, %186 : vector<8x128xf32>
    %189 = arith.addf %167, %188 : vector<8x128xf32>
    %c17 = arith.constant 17 : index
    %190 = memref.load %arg1[%c17] : memref<61xf32, #tpu.memory_space<smem>>
    %c37 = arith.constant 37 : index
    %191 = memref.load %arg1[%c37] : memref<61xf32, #tpu.memory_space<smem>>
    %c57 = arith.constant 57 : index
    %192 = memref.load %arg1[%c57] : memref<61xf32, #tpu.memory_space<smem>>
    %193 = vector.broadcast %190 : f32 to vector<8x128xf32>
    %194 = arith.mulf %193, %0 : vector<8x128xf32>
    %195 = vector.broadcast %191 : f32 to vector<8x128xf32>
    %196 = arith.addf %194, %195 : vector<8x128xf32>
    %197 = math.tanh %196 : vector<8x128xf32>
    %198 = vector.broadcast %192 : f32 to vector<8x128xf32>
    %199 = arith.mulf %198, %197 : vector<8x128xf32>
    %200 = arith.addf %178, %199 : vector<8x128xf32>
    %c18 = arith.constant 18 : index
    %201 = memref.load %arg1[%c18] : memref<61xf32, #tpu.memory_space<smem>>
    %c38 = arith.constant 38 : index
    %202 = memref.load %arg1[%c38] : memref<61xf32, #tpu.memory_space<smem>>
    %c58 = arith.constant 58 : index
    %203 = memref.load %arg1[%c58] : memref<61xf32, #tpu.memory_space<smem>>
    %204 = vector.broadcast %201 : f32 to vector<8x128xf32>
    %205 = arith.mulf %204, %0 : vector<8x128xf32>
    %206 = vector.broadcast %202 : f32 to vector<8x128xf32>
    %207 = arith.addf %205, %206 : vector<8x128xf32>
    %208 = math.tanh %207 : vector<8x128xf32>
    %209 = vector.broadcast %203 : f32 to vector<8x128xf32>
    %210 = arith.mulf %209, %208 : vector<8x128xf32>
    %211 = arith.addf %189, %210 : vector<8x128xf32>
    %c19 = arith.constant 19 : index
    %212 = memref.load %arg1[%c19] : memref<61xf32, #tpu.memory_space<smem>>
    %c39 = arith.constant 39 : index
    %213 = memref.load %arg1[%c39] : memref<61xf32, #tpu.memory_space<smem>>
    %c59 = arith.constant 59 : index
    %214 = memref.load %arg1[%c59] : memref<61xf32, #tpu.memory_space<smem>>
    %215 = vector.broadcast %212 : f32 to vector<8x128xf32>
    %216 = arith.mulf %215, %0 : vector<8x128xf32>
    %217 = vector.broadcast %213 : f32 to vector<8x128xf32>
    %218 = arith.addf %216, %217 : vector<8x128xf32>
    %219 = math.tanh %218 : vector<8x128xf32>
    %220 = vector.broadcast %214 : f32 to vector<8x128xf32>
    %221 = arith.mulf %220, %219 : vector<8x128xf32>
    %222 = arith.addf %200, %221 : vector<8x128xf32>
    %223 = arith.addf %211, %222 : vector<8x128xf32>
    %c60 = arith.constant 60 : index
    %224 = memref.load %arg1[%c60] : memref<61xf32, #tpu.memory_space<smem>>
    %225 = vector.broadcast %224 : f32 to vector<8x128xf32>
    %226 = arith.addf %223, %225 : vector<8x128xf32>
    %c0_3 = arith.constant 0 : index
    %c0_4 = arith.constant 0 : index
    %227 = vector.load %arg3[%c0_3, %c0_4] : memref<8x128xf32, #tpu.memory_space<vmem>>, vector<8x128xf32>
    tpu.vector_store %arg3[%c0_3, %c0_4], %226 {strides = array<i32>} : memref<8x128xf32, #tpu.memory_space<vmem>>, vector<8x128xf32>,
    return
  }
  func.func @transform_0(%arg0: i32) -> i32 {
    %c0_i32 = arith.constant 0 : i32
    %c0_i32_0 = arith.constant 0 : i32
    return %c0_i32 : i32
  }
  func.func @transform_1(%arg0: i32) -> (i32, i32) {
    %c0_i32 = arith.constant 0 : i32
    %c0_i32_0 = arith.constant 0 : i32
    return %arg0, %c0_i32 : i32, i32
  }
  func.func @transform_2(%arg0: i32) -> (i32, i32) {
    %c0_i32 = arith.constant 0 : i32
    %c0_i32_0 = arith.constant 0 : i32
    return %arg0, %c0_i32 : i32, i32
  }
}

</mosaic_0001>

<llo_original>
// kernel: tpu_custom_call.1
$region0: #{tpu_custom_call.1}
  #allocation0 [shape = 'u32[]', space=smem, size = 0x4, offset = 0x4, fixed_abs, tag = 'smem constant byte address 0x4 - core index']
  #allocation1 [shape = 'u32[144,128]{1,0:T(1,128)}', space=vmem, size = 0x12000, scoped, tag = 'internal scratch']
  %s0 = inlined_call_operand.hbm [shape: f32[61], index: 0, kind: input, shape index: {}]
  %s1 = inlined_call_operand.hbm [shape: f32[8,128], index: 1, kind: input, shape index: {}]
  %s2 = inlined_call_operand.hbm [shape: f32[8,128], index: 2, kind: output, shape index: {}]
  %s3 = sld [smem:[#allocation0]]
  $region26: #{tpu_custom_call.1} parent=0
    _
  %s5 = ssub.s32 1, %s3
  %s6 = scalar_select 0, %s5, %s3
  $region1: #{tpu_custom_call.1} parent=0
    #allocation2 [shape = 'u8[512]{0}', space=smem, size = 0x200, scoped, tag = 'input window, operand 0, single buffered']
    #allocation3 [shape = 's32[1]{0}', space=sflag, size = 0x4, scoped, tag = 'scoped memory for tpu_custom_call.1']
    #allocation4 [shape = 's32[1]{0}', space=sflag, size = 0x4, scoped, tag = 'scoped memory for tpu_custom_call.1']
    #allocation5 [shape = 's32[1]{0}', space=sflag, size = 0x4, scoped, tag = 'scoped memory for tpu_custom_call.1']
    #allocation6 [shape = 'u8[4096]{0}', space=vmem, size = 0x1000, scoped, tag = 'input window, operand 1, single buffered']
    #allocation7 [shape = 'u8[4096]{0}', space=vmem, size = 0x1000, scoped, tag = 'output window, operand 0, single buffered']
    %7 = vsyncpa [#allocation5], 0
    %8 = vsyncpa [#allocation3], 0
    %9 = vsyncpa [#allocation4], 0
    // Predicated region
    $region2: #{tpu_custom_call.1} parent=1 // pred_check
      _
    $region3: #{tpu_custom_call.1} parent=1 // pred_check_branch
      %11 = sbr.rel (0) target = $region5
    $region4: #{tpu_custom_call.1} parent=1 // pred_region
      %s13 = ssub.s32 16, 16
      %14 = vsyncadd [#allocation5], %s13
      %17 = dma.hbm_to_smem %s0, 16, [#allocation2], [#allocation5]
    $region5: #{tpu_custom_call.1} parent=1 // pred_fallthru
      _
    // Predicated region
    $region6: #{tpu_custom_call.1} parent=1 // pred_check
      _
    $region7: #{tpu_custom_call.1} parent=1 // pred_check_branch
      %19 = sbr.rel (0) target = $region9
    $region8: #{tpu_custom_call.1} parent=1 // pred_region
      %s21 = ssub.s32 128, 128
      %22 = vsyncadd [#allocation3], %s21
      %s24 = sshll.u32 [#allocation6], 4
      %s25 = int_to_ptr.vmem [resolvable:$true] %s24
      %27 = dma.hbm_to_vmem [thread:$0]  %s1, 128, %s25, [#allocation3]
    $region9: #{tpu_custom_call.1} parent=1 // pred_fallthru
      _
    // Predicated region
    $region10: #{tpu_custom_call.1} parent=1 // pred_check
      _
    $region11: #{tpu_custom_call.1} parent=1 // pred_check_branch
      %29 = sbr.rel (0) target = $region13
    $region12: #{tpu_custom_call.1} parent=1 // pred_region
      %30 = dma.done [#allocation5], 16
    $region13: #{tpu_custom_call.1} parent=1 // pred_fallthru
      _
    // Predicated region
    $region14: #{tpu_custom_call.1} parent=1 // pred_check
      _
    $region15: #{tpu_custom_call.1} parent=1 // pred_check_branch
      %32 = sbr.rel (0) target = $region17
    $region16: #{tpu_custom_call.1} parent=1 // pred_region
      %33 = dma.done [#allocation3], 128
    $region17: #{tpu_custom_call.1} parent=1 // pred_fallthru
      _
    %34 = sfence
    %v35 = vld [vmem:[#allocation6] sm:$0xff]
    %s36 = sld [smem:[#allocation2]]
    %s37 = sld [smem:[#allocation2 + $0x14]]
    %s38 = sld [smem:[#allocation2 + $0x28]]
    %v39 = vstv %s36
    %v40 = vmul.f32 %v39, %v35
    %v41 = vstv %s37
    %v42 = vadd.f32 %v40, %v41
    %v43 = vtanh.pop %v42
    %v44 = vstv %s38
    %v45 = vmul.f32 %v44, %v43
    %v46 = vadd.f32 %v45, 0.0
    %s47 = sld [smem:[#allocation2 + $0x1]]
    %s48 = sld [smem:[#allocation2 + $0x15]]
    %s49 = sld [smem:[#allocation2 + $0x29]]
    %v50 = vstv %s47
    %v51 = vmul.f32 %v50, %v35
    %v52 = vstv %s48
    %v53 = vadd.f32 %v51, %v52
    %v54 = vtanh.pop %v53
    %v55 = vstv %s49
    %v56 = vmul.f32 %v55, %v54
    %v57 = vadd.f32 %v56, 0.0
    %s58 = sld [smem:[#allocation2 + $0x2]]
    %s59 = sld [smem:[#allocation2 + $0x16]]
    %s60 = sld [smem:[#allocation2 + $0x2a]]
    %v61 = vstv %s58
    %v62 = vmul.f32 %v61, %v35
    %v63 = vstv %s59
    %v64 = vadd.f32 %v62, %v63
    %v65 = vtanh.pop %v64
    %v66 = vstv %s60
    %v67 = vmul.f32 %v66, %v65
    %v68 = vadd.f32 %v46, %v67
    %s69 = sld [smem:[#allocation2 + $0x3]]
    %s70 = sld [smem:[#allocation2 + $0x17]]
    %s71 = sld [smem:[#allocation2 + $0x2b]]
    %v72 = vstv %s69
    %v73 = vmul.f32 %v72, %v35
    %v74 = vstv %s70
    %v75 = vadd.f32 %v73, %v74
    %v76 = vtanh.pop %v75
    %v77 = vstv %s71
    %v78 = vmul.f32 %v77, %v76
    %v79 = vadd.f32 %v57, %v78
    %s80 = sld [smem:[#allocation2 + $0x4]]
    %s81 = sld [smem:[#allocation2 + $0x18]]
    %s82 = sld [smem:[#allocation2 + $0x2c]]
    %v83 = vstv %s80
    %v84 = vmul.f32 %v83, %v35
    %v85 = vstv %s81
    %v86 = vadd.f32 %v84, %v85
    %v87 = vtanh.pop %v86
    %v88 = vstv %s82
    %v89 = vmul.f32 %v88, %v87
    %v90 = vadd.f32 %v68, %v89
    %s91 = sld [smem:[#allocation2 + $0x5]]
    %s92 = sld [smem:[#allocation2 + $0x19]]
    %s93 = sld [smem:[#allocation2 + $0x2d]]
    %v94 = vstv %s91
    %v95 = vmul.f32 %v94, %v35
    %v96 = vstv %s92
    %v97 = vadd.f32 %v95, %v96
    %v98 = vtanh.pop %v97
    %v99 = vstv %s93
    %v100 = vmul.f32 %v99, %v98
    %v101 = vadd.f32 %v79, %v100
    %s102 = sld [smem:[#allocation2 + $0x6]]
    %s103 = sld [smem:[#allocation2 + $0x1a]]
    %s104 = sld [smem:[#allocation2 + $0x2e]]
    %v105 = vstv %s102
    %v106 = vmul.f32 %v105, %v35
    %v107 = vstv %s103
    %v108 = vadd.f32 %v106, %v107
    %v109 = vtanh.pop %v108
    %v110 = vstv %s104
    %v111 = vmul.f32 %v110, %v109
    %v112 = vadd.f32 %v90, %v111
    %s113 = sld [smem:[#allocation2 + $0x7]]
    %s114 = sld [smem:[#allocation2 + $0x1b]]
    %s115 = sld [smem:[#allocation2 + $0x2f]]
    %v116 = vstv %s113
    %v117 = vmul.f32 %v116, %v35
    %v118 = vstv %s114
    %v119 = vadd.f32 %v117, %v118
    %v120 = vtanh.pop %v119
    %v121 = vstv %s115
    %v122 = vmul.f32 %v121, %v120
    %v123 = vadd.f32 %v101, %v122
    %s124 = sld [smem:[#allocation2 + $0x8]]
    %s125 = sld [smem:[#allocation2 + $0x1c]]
    %s126 = sld [smem:[#allocation2 + $0x30]]
    %v127 = vstv %s124
    %v128 = vmul.f32 %v127, %v35
    %v129 = vstv %s125
    %v130 = vadd.f32 %v128, %v129
    %v131 = vtanh.pop %v130
    %v132 = vstv %s126
    %v133 = vmul.f32 %v132, %v131
    %v134 = vadd.f32 %v112, %v133
    %s135 = sld [smem:[#allocation2 + $0x9]]
    %s136 = sld [smem:[#allocation2 + $0x1d]]
    %s137 = sld [smem:[#allocation2 + $0x31]]
    %v138 = vstv %s135
    %v139 = vmul.f32 %v138, %v35
    %v140 = vstv %s136
    %v141 = vadd.f32 %v139, %v140
    %v142 = vtanh.pop %v141
    %v143 = vstv %s137
    %v144 = vmul.f32 %v143, %v142
    %v145 = vadd.f32 %v123, %v144
    %s146 = sld [smem:[#allocation2 + $0xa]]
    %s147 = sld [smem:[#allocation2 + $0x1e]]
    %s148 = sld [smem:[#allocation2 + $0x32]]
    %v149 = vstv %s146
    %v150 = vmul.f32 %v149, %v35
    %v151 = vstv %s147
    %v152 = vadd.f32 %v150, %v151
    %v153 = vtanh.pop %v152
    %v154 = vstv %s148
    %v155 = vmul.f32 %v154, %v153
    %v156 = vadd.f32 %v134, %v155
    %s157 = sld [smem:[#allocation2 + $0xb]]
    %s158 = sld [smem:[#allocation2 + $0x1f]]
    %s159 = sld [smem:[#allocation2 + $0x33]]
    %v160 = vstv %s157
    %v161 = vmul.f32 %v160, %v35
    %v162 = vstv %s158
    %v163 = vadd.f32 %v161, %v162
    %v164 = vtanh.pop %v163
    %v165 = vstv %s159
    %v166 = vmul.f32 %v165, %v164
    %v167 = vadd.f32 %v145, %v166
    %s168 = sld [smem:[#allocation2 + $0xc]]
    %s169 = sld [smem:[#allocation2 + $0x20]]
    %s170 = sld [smem:[#allocation2 + $0x34]]
    %v171 = vstv %s168
    %v172 = vmul.f32 %v171, %v35
    %v173 = vstv %s169
    %v174 = vadd.f32 %v172, %v173
    %v175 = vtanh.pop %v174
    %v176 = vstv %s170
    %v177 = vmul.f32 %v176, %v175
    %v178 = vadd.f32 %v156, %v177
    %s179 = sld [smem:[#allocation2 + $0xd]]
    %s180 = sld [smem:[#allocation2 + $0x21]]
    %s181 = sld [smem:[#allocation2 + $0x35]]
    %v182 = vstv %s179
    %v183 = vmul.f32 %v182, %v35
    %v184 = vstv %s180
    %v185 = vadd.f32 %v183, %v184
    %v186 = vtanh.pop %v185
    %v187 = vstv %s181
    %v188 = vmul.f32 %v187, %v186
    %v189 = vadd.f32 %v167, %v188
    %s190 = sld [smem:[#allocation2 + $0xe]]
    %s191 = sld [smem:[#allocation2 + $0x22]]
    %s192 = sld [smem:[#allocation2 + $0x36]]
    %v193 = vstv %s190
    %v194 = vmul.f32 %v193, %v35
    %v195 = vstv %s191
    %v196 = vadd.f32 %v194, %v195
    %v197 = vtanh.pop %v196
    %v198 = vstv %s192
    %v199 = vmul.f32 %v198, %v197
    %v200 = vadd.f32 %v178, %v199
    %s201 = sld [smem:[#allocation2 + $0xf]]
    %s202 = sld [smem:[#allocation2 + $0x23]]
    %s203 = sld [smem:[#allocation2 + $0x37]]
    %v204 = vstv %s201
    %v205 = vmul.f32 %v204, %v35
    %v206 = vstv %s202
    %v207 = vadd.f32 %v205, %v206
    %v208 = vtanh.pop %v207
    %v209 = vstv %s203
    %v210 = vmul.f32 %v209, %v208
    %v211 = vadd.f32 %v189, %v210
    %s212 = sld [smem:[#allocation2 + $0x10]]
    %s213 = sld [smem:[#allocation2 + $0x24]]
    %s214 = sld [smem:[#allocation2 + $0x38]]
    %v215 = vstv %s212
    %v216 = vmul.f32 %v215, %v35
    %v217 = vstv %s213
    %v218 = vadd.f32 %v216, %v217
    %v219 = vtanh.pop %v218
    %v220 = vstv %s214
    %v221 = vmul.f32 %v220, %v219
    %v222 = vadd.f32 %v200, %v221
    %s223 = sld [smem:[#allocation2 + $0x11]]
    %s224 = sld [smem:[#allocation2 + $0x25]]
    %s225 = sld [smem:[#allocation2 + $0x39]]
    %v226 = vstv %s223
    %v227 = vmul.f32 %v226, %v35
    %v228 = vstv %s224
    %v229 = vadd.f32 %v227, %v228
    %v230 = vtanh.pop %v229
    %v231 = vstv %s225
    %v232 = vmul.f32 %v231, %v230
    %v233 = vadd.f32 %v211, %v232
    %s234 = sld [smem:[#allocation2 + $0x12]]
    %s235 = sld [smem:[#allocation2 + $0x26]]
    %s236 = sld [smem:[#allocation2 + $0x3a]]
    %v237 = vstv %s234
    %v238 = vmul.f32 %v237, %v35
    %v239 = vstv %s235
    %v240 = vadd.f32 %v238, %v239
    %v241 = vtanh.pop %v240
    %v242 = vstv %s236
    %v243 = vmul.f32 %v242, %v241
    %v244 = vadd.f32 %v222, %v243
    %s245 = sld [smem:[#allocation2 + $0x13]]
    %s246 = sld [smem:[#allocation2 + $0x27]]
    %s247 = sld [smem:[#allocation2 + $0x3b]]
    %v248 = vstv %s245
    %v249 = vmul.f32 %v248, %v35
    %v250 = vstv %s246
    %v251 = vadd.f32 %v249, %v250
    %v252 = vtanh.pop %v251
    %v253 = vstv %s247
    %v254 = vmul.f32 %v253, %v252
    %v255 = vadd.f32 %v233, %v254
    %v256 = vadd.f32 %v244, %v255
    %s257 = sld [smem:[#allocation2 + $0x3c]]
    %v258 = vstv %s257
    %v259 = vadd.f32 %v256, %v258
    %260 = vst [vmem:[#allocation7] sm:$0xff] %v259
    // Predicated region
    $region18: #{tpu_custom_call.1} parent=1 // pred_check
      _
    $region19: #{tpu_custom_call.1} parent=1 // pred_check_branch
      %262 = sbr.rel (0) target = $region21
    $region20: #{tpu_custom_call.1} parent=1 // pred_region
      %s264 = ssub.s32 128, 128
      %265 = vsyncadd [#allocation4], %s264
      %s267 = sshll.u32 [#allocation7], 4
      %s268 = int_to_ptr.vmem [resolvable:$true] %s267
      %270 = dma.vmem_to_hbm [thread:$0]  %s268, 128, %s2, [#allocation4]
    $region21: #{tpu_custom_call.1} parent=1 // pred_fallthru
      _
    // Predicated region
    $region22: #{tpu_custom_call.1} parent=1 // pred_check
      _
    $region23: #{tpu_custom_call.1} parent=1 // pred_check_branch
      %272 = sbr.rel (0) target = $region25
    $region24: #{tpu_custom_call.1} parent=1 // pred_region
      %273 = dma.done [#allocation4], 128
    $region25: #{tpu_custom_call.1} parent=1 // pred_fallthru
      _
    %274 = vsyncpa [#allocation3], 1
    %275 = vsyncpa [#allocation4], 1
    %276 = vsyncpa [#allocation5], 1

</llo_original>
